<compile_context>
chip_gen: v5e
topology: v5e:2x2
jax: 0.10.0
libtpu: 0.0.40
codegen_flags: <defaults>
</compile_context>

<pallas_src>
import jax
import jax.numpy as jnp
from jax.experimental import pallas as pl
from jax.experimental.pallas import tpu as pltpu


def _round_up(a: int, b: int) -> int:
    return ((a + b - 1) // b) * b


def _bert_lm_head_kernel(x_ref, w1_ref, b1_ref, g_ref, beta_ref,
                         w2_ref, b2_ref, o_ref, h_ref):
    # x_ref:  (tm, H)   w1_ref: (H, H)    b1/g/beta: (1, H)
    # w2_ref: (H, tn)   b2_ref: (1, tn)   o_ref: (tm, tn)
    # h_ref:  (tm, H) f32 scratch, persists across the (inner) vocab axis.

    # Compute the transform (dense + gelu + LayerNorm) only once per row tile.
    @pl.when(pl.program_id(1) == 0)
    def _():
        # dense (hidden -> hidden): native-dtype operands, f32 accumulation
        h = jnp.dot(x_ref[...], w1_ref[...],
                    preferred_element_type=jnp.float32)
        h = h + b1_ref[...].astype(jnp.float32)

        # exact erf GELU (matches PyTorch/HF "gelu")
        h = 0.5 * h * (1.0 + jax.lax.erf(h * (1.0 / jnp.sqrt(2.0))))

        # LayerNorm over last dim, eps=1e-12, f32 math
        mu = jnp.mean(h, axis=-1, keepdims=True)
        diff = h - mu
        var = jnp.mean(diff * diff, axis=-1, keepdims=True)
        h = diff * jax.lax.rsqrt(var + 1e-12)
        h = h * g_ref[...].astype(jnp.float32) + beta_ref[...].astype(jnp.float32)

        h_ref[...] = h

    # decoder (hidden -> vocab tile); cast h to the weight dtype so bf16
    # weights get a native bf16 MXU pass, accumulate in f32.
    y = jnp.dot(h_ref[...].astype(w2_ref.dtype), w2_ref[...],
                preferred_element_type=jnp.float32)
    y = y + b2_ref[...].astype(jnp.float32)
    o_ref[...] = y.astype(o_ref.dtype)


def bert_lm_prediction_head(x, w1, b1, gamma, beta, w2, b2, *,
                            tm=256, tn=1024,
                            vmem_limit_bytes=64 * 1024 * 1024):
    """x: [B, S, H] -> logits [B, S, V].

    Weights stored pre-transposed as [in, out]:
      w1: [H, H], b1: [H], gamma/beta: [H], w2: [H, V], b2: [V].
    """
    B, S, H = x.shape
    V = w2.shape[1]
    M = B * S

    # Clamp tiles to the (padded) problem so tiny inputs don't over-pad.
    tm = max(8, min(tm, _round_up(M, 8)))
    tn = max(128, min(tn, _round_up(V, 128)))

    Mp = _round_up(M, tm)
    Vp = _round_up(V, tn)

    x2 = x.reshape(M, H)
    if Mp != M:
        x2 = jnp.pad(x2, ((0, Mp - M), (0, 0)))
    w2p = w2 if Vp == V else jnp.pad(w2, ((0, 0), (0, Vp - V)))
    b2p = b2 if Vp == V else jnp.pad(b2, (0, Vp - V))

    # biases / norm params as (1, dim) 2-D VMEM tiles
    b1_2 = b1.reshape(1, H)
    g_2 = gamma.reshape(1, H)
    be_2 = beta.reshape(1, H)
    b2_2 = b2p.reshape(1, Vp)

    grid = (Mp // tm, Vp // tn)   # row axis leading (parallel), vocab inner

    cost = pl.CostEstimate(
        flops=2 * M * H * (H + V),
        transcendentals=M * H,
        bytes_accessed=(x2.size * x2.dtype.itemsize
                        + w1.size * w1.dtype.itemsize
                        + w2p.size * w2p.dtype.itemsize
                        + M * V * x.dtype.itemsize),
    )

    # TODO(synk): W1/b1/gamma/beta have constant index_maps; single-buffering
    # them (pl.Buffered(1)) would save a little VMEM on v7x's 64 MiB budget.
    out = pl.pallas_call(
        _bert_lm_head_kernel,
        out_shape=jax.ShapeDtypeStruct((Mp, Vp), x.dtype),
        grid_spec=pltpu.PrefetchScalarGridSpec(
            num_scalar_prefetch=0,
            grid=grid,
            in_specs=[
                pl.BlockSpec((tm, H), lambda i, j: (i, 0)),   # x row tile
                pl.BlockSpec((H, H), lambda i, j: (0, 0)),    # W1 (resident)
                pl.BlockSpec((1, H), lambda i, j: (0, 0)),    # b1
                pl.BlockSpec((1, H), lambda i, j: (0, 0)),    # gamma
                pl.BlockSpec((1, H), lambda i, j: (0, 0)),    # beta
                pl.BlockSpec((H, tn), lambda i, j: (0, j)),   # W2 vocab tile
                pl.BlockSpec((1, tn), lambda i, j: (0, j)),   # b2 vocab tile
            ],
            out_specs=pl.BlockSpec((tm, tn), lambda i, j: (i, j)),
            scratch_shapes=[pltpu.VMEM((tm, H), jnp.float32)],  # cached h
        ),
        compiler_params=pltpu.CompilerParams(
            dimension_semantics=("parallel", "arbitrary"),
            vmem_limit_bytes=vmem_limit_bytes),
        cost_estimate=cost,
    )(x2, w1, b1_2, g_2, be_2, w2p, b2_2)

    return out[:M, :V].reshape(B, S, V)


def _reference(x, w1, b1, gamma, beta, w2, b2):
    h = jnp.einsum("bsh,hk->bsk", x, w1) + b1
    h = 0.5 * h * (1.0 + jax.lax.erf(h / jnp.sqrt(2.0)))
    mu = jnp.mean(h, axis=-1, keepdims=True)
    var = jnp.mean((h - mu) ** 2, axis=-1, keepdims=True)
    h = (h - mu) * jax.lax.rsqrt(var + 1e-12) * gamma + beta
    return jnp.einsum("bsh,hv->bsv", h, w2) + b2


if __name__ == "__main__":
    # Small shapes chosen to exercise: multiple row tiles, multiple vocab
    # tiles, row padding (M=21 not a multiple of tm=8), and vocab padding
    # (V=300 not a multiple of tn=128).
    B, S, H, V = 3, 7, 128, 300   # batch, seq, hidden_size, vocab_size

    key = jax.random.PRNGKey(0)
    k = jax.random.split(key, 8)
    x = jax.random.normal(k[0], (B, S, H), dtype=jnp.float32)

    # parameters stored as [in, out] for the kernel
    w1 = jax.random.normal(k[1], (H, H), dtype=jnp.float32) * 0.02
    b1 = jax.random.normal(k[2], (H,), dtype=jnp.float32) * 0.02
    gamma = jnp.ones((H,), dtype=jnp.float32)
    beta = jnp.zeros((H,), dtype=jnp.float32)
    w2 = jax.random.normal(k[3], (H, V), dtype=jnp.float32) * 0.02
    b2 = jax.random.normal(k[4], (V,), dtype=jnp.float32) * 0.02

    out = bert_lm_prediction_head(x, w1, b1, gamma, beta, w2, b2,
                                  tm=8, tn=128)
    out = jax.block_until_ready(out)

    ref = _reference(x, w1, b1, gamma, beta, w2, b2)
    assert out.shape == (B, S, V)
    assert jnp.allclose(out, ref, atol=1e-4, rtol=1e-4)
    print("KERNEL_OK")
</pallas_src>

<mosaic_0001>
module attributes {stable_mosaic.version = 11 : i64} {
  func.func @_bert_lm_head_kernel(%arg0: i32, %arg1: i32, %arg2: memref<8x128xf32, #tpu.memory_space<vmem>>, %arg3: memref<128x128xf32, #tpu.memory_space<vmem>>, %arg4: memref<1x128xf32, #tpu.memory_space<vmem>>, %arg5: memref<1x128xf32, #tpu.memory_space<vmem>>, %arg6: memref<1x128xf32, #tpu.memory_space<vmem>>, %arg7: memref<128x128xf32, #tpu.memory_space<vmem>>, %arg8: memref<1x128xf32, #tpu.memory_space<vmem>>, %arg9: memref<8x128xf32, #tpu.memory_space<vmem>>, %arg10: memref<8x128xf32, #tpu.memory_space<vmem>>) attributes {dimension_semantics = [#tpu.dimension_semantics<parallel>, #tpu.dimension_semantics<arbitrary>], iteration_bounds = array<i64: 3, 3>, scalar_prefetch = 0 : i64, scratch_operands = 1 : i64, tpu.core_type = #tpu.core_type<tc>, window_params = [{transform_indices = @transform_0, window_bounds = array<i64: 8, 128>}, {pipeline_mode = #tpu.pipeline_mode<synchronous>, transform_indices = @transform_1, window_bounds = array<i64: 128, 128>}, {pipeline_mode = #tpu.pipeline_mode<synchronous>, transform_indices = @transform_2, window_bounds = array<i64: 1, 128>}, {pipeline_mode = #tpu.pipeline_mode<synchronous>, transform_indices = @transform_3, window_bounds = array<i64: 1, 128>}, {pipeline_mode = #tpu.pipeline_mode<synchronous>, transform_indices = @transform_4, window_bounds = array<i64: 1, 128>}, {transform_indices = @transform_5, window_bounds = array<i64: 128, 128>}, {transform_indices = @transform_6, window_bounds = array<i64: 1, 128>}, {transform_indices = @transform_7, window_bounds = array<i64: 8, 128>}]} {
    %c0_i32 = arith.constant 0 : i32
    %0 = arith.cmpi eq, %arg1, %c0_i32 : i32
    %1 = arith.extui %0 : i1 to i32
    %c0_i32_0 = arith.constant 0 : i32
    %2 = arith.cmpi ne, %1, %c0_i32_0 : i32
    scf.if %2 {
      %c0_8 = arith.constant 0 : index
      %c0_9 = arith.constant 0 : index
      %10 = vector.load %arg2[%c0_8, %c0_9] : memref<8x128xf32, #tpu.memory_space<vmem>>, vector<8x128xf32>
      %c0_10 = arith.constant 0 : index
      %c0_11 = arith.constant 0 : index
      %11 = vector.load %arg3[%c0_10, %c0_11] : memref<128x128xf32, #tpu.memory_space<vmem>>, vector<128x128xf32>
      %cst_12 = arith.constant dense<0.000000e+00> : vector<8x128xf32>
      %12 = tpu.matmul %10, %11, %cst_12 {dimension_numbers = #tpu.dot_dimension_numbers<[1], [0], [0], [1], [0, 0, 1, 1], [], []>} : vector<8x128xf32>, vector<128x128xf32>, vector<8x128xf32> -> vector<8x128xf32>
      %c0_13 = arith.constant 0 : index
      %c0_14 = arith.constant 0 : index
      %13 = vector.load %arg4[%c0_13, %c0_14] : memref<1x128xf32, #tpu.memory_space<vmem>>, vector<1x128xf32>
      %14 = vector.broadcast %13 : vector<1x128xf32> to vector<8x128xf32>
      %15 = arith.addf %12, %14 : vector<8x128xf32>
      %cst_15 = arith.constant 5.000000e-01 : f32
      %16 = vector.broadcast %cst_15 : f32 to vector<8x128xf32>
      %17 = arith.mulf %16, %15 : vector<8x128xf32>
      %cst_16 = arith.constant 2.000000e+00 : f32
      %18 = math.sqrt %cst_16 : f32
      %cst_17 = arith.constant 1.000000e+00 : f32
      %19 = arith.divf %cst_17, %18 : f32
      %20 = vector.broadcast %19 : f32 to vector<8x128xf32>
      %21 = arith.mulf %15, %20 : vector<8x128xf32>
      %22 = math.erf %21 : vector<8x128xf32>
      %cst_18 = arith.constant 1.000000e+00 : f32
      %23 = vector.broadcast %cst_18 : f32 to vector<8x128xf32>
      %24 = arith.addf %23, %22 : vector<8x128xf32>
      %25 = arith.mulf %17, %24 : vector<8x128xf32>
      %cst_19 = arith.constant dense<0.000000e+00> : vector<8xf32>
      %26 = vector.multi_reduction <add>, %25, %cst_19 [1] : vector<8x128xf32> to vector<8xf32>
      %27 = vector.shape_cast %26 : vector<8xf32> to vector<8x1xf32>
      %cst_20 = arith.constant 1.280000e+02 : f32
      %28 = vector.broadcast %cst_20 : f32 to vector<8x1xf32>
      %29 = arith.divf %27, %28 : vector<8x1xf32>
      %30 = vector.broadcast %29 : vector<8x1xf32> to vector<8x128xf32>
      %31 = arith.subf %25, %30 : vector<8x128xf32>
      %32 = arith.mulf %31, %31 : vector<8x128xf32>
      %cst_21 = arith.constant dense<0.000000e+00> : vector<8xf32>
      %33 = vector.multi_reduction <add>, %32, %cst_21 [1] : vector<8x128xf32> to vector<8xf32>
      %34 = vector.shape_cast %33 : vector<8xf32> to vector<8x1xf32>
      %cst_22 = arith.constant 1.280000e+02 : f32
      %35 = vector.broadcast %cst_22 : f32 to vector<8x1xf32>
      %36 = arith.divf %34, %35 : vector<8x1xf32>
      %cst_23 = arith.constant 9.99999996E-13 : f32
      %37 = vector.broadcast %cst_23 : f32 to vector<8x1xf32>
      %38 = arith.addf %36, %37 : vector<8x1xf32>
      %39 = math.rsqrt %38 : vector<8x1xf32>
      %40 = vector.broadcast %39 : vector<8x1xf32> to vector<8x128xf32>
      %41 = arith.mulf %31, %40 : vector<8x128xf32>
      %c0_24 = arith.constant 0 : index
      %c0_25 = arith.constant 0 : index
      %42 = vector.load %arg5[%c0_24, %c0_25] : memref<1x128xf32, #tpu.memory_space<vmem>>, vector<1x128xf32>
      %43 = vector.broadcast %42 : vector<1x128xf32> to vector<8x128xf32>
      %44 = arith.mulf %41, %43 : vector<8x128xf32>
      %c0_26 = arith.constant 0 : index
      %c0_27 = arith.constant 0 : index
      %45 = vector.load %arg6[%c0_26, %c0_27] : memref<1x128xf32, #tpu.memory_space<vmem>>, vector<1x128xf32>
      %46 = vector.broadcast %45 : vector<1x128xf32> to vector<8x128xf32>
      %47 = arith.addf %44, %46 : vector<8x128xf32>
      %c0_28 = arith.constant 0 : index
      %c0_29 = arith.constant 0 : index
      %48 = vector.load %arg10[%c0_28, %c0_29] : memref<8x128xf32, #tpu.memory_space<vmem>>, vector<8x128xf32>
      tpu.vector_store %arg10[%c0_28, %c0_29], %47 {strides = array<i32>} : memref<8x128xf32, #tpu.memory_space<vmem>>, vector<8x128xf32>,
    } else {
    }
    %c0 = arith.constant 0 : index
    %c0_1 = arith.constant 0 : index
    %3 = vector.load %arg10[%c0, %c0_1] : memref<8x128xf32, #tpu.memory_space<vmem>>, vector<8x128xf32>
    %c0_2 = arith.constant 0 : index
    %c0_3 = arith.constant 0 : index
    %4 = vector.load %arg7[%c0_2, %c0_3] : memref<128x128xf32, #tpu.memory_space<vmem>>, vector<128x128xf32>
    %cst = arith.constant dense<0.000000e+00> : vector<8x128xf32>
    %5 = tpu.matmul %3, %4, %cst {dimension_numbers = #tpu.dot_dimension_numbers<[1], [0], [0], [1], [0, 0, 1, 1], [], []>} : vector<8x128xf32>, vector<128x128xf32>, vector<8x128xf32> -> vector<8x128xf32>
    %c0_4 = arith.constant 0 : index
    %c0_5 = arith.constant 0 : index
    %6 = vector.load %arg8[%c0_4, %c0_5] : memref<1x128xf32, #tpu.memory_space<vmem>>, vector<1x128xf32>
    %7 = vector.broadcast %6 : vector<1x128xf32> to vector<8x128xf32>
    %8 = arith.addf %5, %7 : vector<8x128xf32>
    %c0_6 = arith.constant 0 : index
    %c0_7 = arith.constant 0 : index
    %9 = vector.load %arg9[%c0_6, %c0_7] : memref<8x128xf32, #tpu.memory_space<vmem>>, vector<8x128xf32>
    tpu.vector_store %arg9[%c0_6, %c0_7], %8 {strides = array<i32>} : memref<8x128xf32, #tpu.memory_space<vmem>>, vector<8x128xf32>,
    return
  }
  func.func @transform_0(%arg0: i32, %arg1: i32) -> (i32, i32) {
    %c0_i32 = arith.constant 0 : i32
    %c0_i32_0 = arith.constant 0 : i32
    return %arg0, %c0_i32 : i32, i32
  }
  func.func @transform_1(%arg0: i32, %arg1: i32) -> (i32, i32) {
    %c0_i32 = arith.constant 0 : i32
    %c0_i32_0 = arith.constant 0 : i32
    %c0_i32_1 = arith.constant 0 : i32
    return %c0_i32, %c0_i32_0 : i32, i32
  }
  func.func @transform_2(%arg0: i32, %arg1: i32) -> (i32, i32) {
    %c0_i32 = arith.constant 0 : i32
    %c0_i32_0 = arith.constant 0 : i32
    %c0_i32_1 = arith.constant 0 : i32
    return %c0_i32, %c0_i32_0 : i32, i32
  }
  func.func @transform_3(%arg0: i32, %arg1: i32) -> (i32, i32) {
    %c0_i32 = arith.constant 0 : i32
    %c0_i32_0 = arith.constant 0 : i32
    %c0_i32_1 = arith.constant 0 : i32
    return %c0_i32, %c0_i32_0 : i32, i32
  }
  func.func @transform_4(%arg0: i32, %arg1: i32) -> (i32, i32) {
    %c0_i32 = arith.constant 0 : i32
    %c0_i32_0 = arith.constant 0 : i32
    %c0_i32_1 = arith.constant 0 : i32
    return %c0_i32, %c0_i32_0 : i32, i32
  }
  func.func @transform_5(%arg0: i32, %arg1: i32) -> (i32, i32) {
    %c0_i32 = arith.constant 0 : i32
    %c0_i32_0 = arith.constant 0 : i32
    return %c0_i32, %arg1 : i32, i32
  }
  func.func @transform_6(%arg0: i32, %arg1: i32) -> (i32, i32) {
    %c0_i32 = arith.constant 0 : i32
    %c0_i32_0 = arith.constant 0 : i32
    return %c0_i32, %arg1 : i32, i32
  }
  func.func @transform_7(%arg0: i32, %arg1: i32) -> (i32, i32) {
    %c0_i32 = arith.constant 0 : i32
    return %arg0, %arg1 : i32, i32
  }
}

</mosaic_0001>

<llo_original>
// kernel: tpu_custom_call.1
$region0: #{tpu_custom_call.1}
  #allocation0 [shape = 'u32[]', space=smem, size = 0x4, offset = 0x4, fixed_abs, tag = 'smem constant byte address 0x4 - core index']
  #allocation1 [shape = 'u32[72,128]{1,0:T(1,128)}', space=vmem, size = 0x9000, scoped, tag = 'internal scratch']
  #allocation2 [shape = 'f32[8,128]{1,0:T(8,128)}', space=vmem, size = 0x1000, scoped, tag = 'scratch operand']
  %s0 = inlined_call_operand.hbm [shape: f32[24,128], index: 0, kind: input, shape index: {}]
  %s1 = inlined_call_operand.hbm [shape: f32[128,128], index: 1, kind: input, shape index: {}]
  %s2 = inlined_call_operand.vmem [shape: f32[1,128], index: 2, kind: input, shape index: {}]
  %s3 = inlined_call_operand.vmem [shape: f32[1,128], index: 3, kind: input, shape index: {}]
  %s4 = inlined_call_operand.hbm [shape: f32[1,128], index: 4, kind: input, shape index: {}]
  %s5 = inlined_call_operand.hbm [shape: f32[128,384], index: 5, kind: input, shape index: {}]
  %s6 = inlined_call_operand.vmem [shape: f32[1,384], index: 6, kind: input, shape index: {}]
  %s7 = inlined_call_operand.hbm [shape: f32[24,384], index: 7, kind: output, shape index: {}]
  %s8 = sld [smem:[#allocation0]]
  $region81: #{tpu_custom_call.1} parent=0
    _
  %s10 = ssub.s32 1, %s8
  %s11 = scalar_select 0, %s10, %s8
  $region1: #{tpu_custom_call.1} parent=0
    #allocation3 [shape = 'u8[8192]{0}', space=vmem, size = 0x2000, scoped, tag = 'input window, operand 0']
    #allocation4 [shape = 's32[2]{0}', space=sflag, size = 0x8, scoped, tag = 'scoped memory for tpu_custom_call.1']
    #allocation5 [shape = 's32[2]{0}', space=sflag, size = 0x8, scoped, tag = 'scoped memory for tpu_custom_call.1']
    #allocation6 [shape = 'u8[65536]{0}', space=vmem, size = 0x10000, scoped, tag = 'input window, operand 1, single buffered']
    #allocation7 [shape = 's32[1]{0}', space=sflag, size = 0x4, scoped, tag = 'scoped memory for tpu_custom_call.1']
    #allocation8 [shape = 'u8[512]{0}', space=vmem, size = 0x400, scoped, tag = 'input window, operand 4, single buffered']
    #allocation9 [shape = 'u8[131072]{0}', space=vmem, size = 0x20000, scoped, tag = 'input window, operand 5']
    #allocation10 [shape = 's32[2]{0}', space=sflag, size = 0x8, scoped, tag = 'scoped memory for tpu_custom_call.1']
    #allocation11 [shape = 'u8[8192]{0}', space=vmem, size = 0x2000, scoped, tag = 'output window, operand 0']
    %12 = vsyncpa [#allocation4], 0
    %s13 = scalar_lea.sflag [#allocation4], 1
    %14 = vsyncpa %s13, 0
    %15 = vsyncpa [#allocation7], 0
    %16 = vsyncpa [#allocation10], 0
    %s17 = scalar_lea.sflag [#allocation10], 1
    %18 = vsyncpa %s17, 0
    %19 = vsyncpa [#allocation5], 0
    %s20 = scalar_lea.sflag [#allocation5], 1
    %21 = vsyncpa %s20, 0
    loop: start=0, step=1, limit=11
    $region2: #{tpu_custom_call.1} parent=1 // loop_pre_header
      _
    $region3: #{tpu_custom_call.1} parent=1 // loop_header
      %s23 = sphi 0, %s27
      %p24 = scmp.ge.s32.totalorder %s23, 11
      %s30 = sphi 0, %s42
      %s31 = sphi 0, %s38
      %s32 = sphi 0, %s30
      %s33 = sphi 0, %s31
      %s34 = sphi 0, %s32
      %s35 = sphi 0, %s33
      %s45 = sphi 0, %s47
      %s48 = sphi 0, %s45
      %s49 = sphi 0, %s48
      %s65 = sphi 0, %s49
      %s69 = sphi 0, %s69
      %s71 = sphi 0, %s69
      %s72 = sphi 0, %s71
      %s86 = sphi 0, %s72
      %s90 = sphi 0, %s90
      %s92 = sphi 0, %s90
      %s93 = sphi 0, %s92
      %s107 = sphi 0, %s93
      %s111 = sphi 0, %s111
      %s113 = sphi 0, %s111
      %s114 = sphi 0, %s113
      %s128 = sphi 0, %s114
      %s132 = sphi 0, %s132
      %s134 = sphi 0, %s132
      %s135 = sphi 0, %s134
      %s149 = sphi 0, %s135
      %s155 = sphi 0, %s157
      %s158 = sphi 0, %s155
      %s159 = sphi 0, %s158
      %s175 = sphi 0, %s159
      %s181 = sphi 0, %s183
      %s184 = sphi 0, %s181
      %s185 = sphi 0, %s184
      %s201 = sphi 0, %s185
      %s209 = sphi 0, %s211
      %s212 = sphi 0, %s209
      %s213 = sphi 0, %s212
      %s229 = sphi 0, %s213
    $region4: #{tpu_custom_call.1} parent=1 // loop_header_branch
      %26 = sbr.rel (%p24) target = $region8
    $region5: #{tpu_custom_call.1} parent=1 // loop_body
      %s28 = ssub.s32 %s23, 1
      %s29 = ssub.s32 %s23, 2
      %s36 = sadd.s32 1, %s31
      %p37 = scmp.ge.s32.totalorder %s36, 3
      %s38 = scalar_select %p37, 0, %s36
      %s39 = sadd.s32 1, %s30
      %s40 = scalar_select %p37, %s39, %s30
      %p41 = scmp.ge.s32.totalorder %s40, 3
      %s42 = scalar_select %p41, 0, %s40
      %s43 = ssub.s32 %s30, %s42
      %p44 = scmp.eq.s32.totalorder %s43, 0
      %s46 = sadd.s32 %s45, 1
      %s47 = scalar_select %p44, %s45, %s46
      %p50 = pneg %p44
      %p51 = scmp.eq.s32.totalorder %s23, 8
      %p52 = por %p50, %p51
      %p53 = scmp.ne.s32.totalorder %s45, %s48
      %p54 = scmp.eq.s32.totalorder %s23, 0
      %p55 = por %p53, %p54
      %p56 = scmp.ne.s32.totalorder %s45, %s48
      %p57 = scmp.eq.s32.totalorder %s28, 8
      %p58 = por %p56, %p57
      %p59 = scmp.ne.s32.totalorder %s48, %s49
      %p60 = scmp.eq.s32.totalorder %s28, 0
      %p61 = por %p59, %p60
      %p62 = scmp.ne.s32.totalorder %s48, %s49
      %p63 = scmp.eq.s32.totalorder %s29, 8
      %p64 = por %p62, %p63
      %p66 = scmp.ne.s32.totalorder %s49, %s65
      %p67 = scmp.eq.s32.totalorder %s29, 0
      %p68 = por %p66, %p67
      %s70 = sadd.s32 %s69, 1
      %p73 = scmp.eq.s32.totalorder %s23, 8
      %p74 = scmp.ne.s32.totalorder %s69, %s71
      %p75 = scmp.eq.s32.totalorder %s23, 0
      %p76 = por %p74, %p75
      %p77 = scmp.ne.s32.totalorder %s69, %s71
      %p78 = scmp.eq.s32.totalorder %s28, 8
      %p79 = por %p77, %p78
      %p80 = scmp.ne.s32.totalorder %s71, %s72
      %p81 = scmp.eq.s32.totalorder %s28, 0
      %p82 = por %p80, %p81
      %p83 = scmp.ne.s32.totalorder %s71, %s72
      %p84 = scmp.eq.s32.totalorder %s29, 8
      %p85 = por %p83, %p84
      %p87 = scmp.ne.s32.totalorder %s72, %s86
      %p88 = scmp.eq.s32.totalorder %s29, 0
      %p89 = por %p87, %p88
      %s91 = sadd.s32 %s90, 1
      %p94 = scmp.eq.s32.totalorder %s23, 8
      %p95 = scmp.ne.s32.totalorder %s90, %s92
      %p96 = scmp.eq.s32.totalorder %s23, 0
      %p97 = por %p95, %p96
      %p98 = scmp.ne.s32.totalorder %s90, %s92
      %p99 = scmp.eq.s32.totalorder %s28, 8
      %p100 = por %p98, %p99
      %p101 = scmp.ne.s32.totalorder %s92, %s93
      %p102 = scmp.eq.s32.totalorder %s28, 0
      %p103 = por %p101, %p102
      %p104 = scmp.ne.s32.totalorder %s92, %s93
      %p105 = scmp.eq.s32.totalorder %s29, 8
      %p106 = por %p104, %p105
      %p108 = scmp.ne.s32.totalorder %s93, %s107
      %p109 = scmp.eq.s32.totalorder %s29, 0
      %p110 = por %p108, %p109
      %s112 = sadd.s32 %s111, 1
      %p115 = scmp.eq.s32.totalorder %s23, 8
      %p116 = scmp.ne.s32.totalorder %s111, %s113
      %p117 = scmp.eq.s32.totalorder %s23, 0
      %p118 = por %p116, %p117
      %p119 = scmp.ne.s32.totalorder %s111, %s113
      %p120 = scmp.eq.s32.totalorder %s28, 8
      %p121 = por %p119, %p120
      %p122 = scmp.ne.s32.totalorder %s113, %s114
      %p123 = scmp.eq.s32.totalorder %s28, 0
      %p124 = por %p122, %p123
      %p125 = scmp.ne.s32.totalorder %s113, %s114
      %p126 = scmp.eq.s32.totalorder %s29, 8
      %p127 = por %p125, %p126
      %p129 = scmp.ne.s32.totalorder %s114, %s128
      %p130 = scmp.eq.s32.totalorder %s29, 0
      %p131 = por %p129, %p130
      %s133 = sadd.s32 %s132, 1
      %p136 = scmp.eq.s32.totalorder %s23, 8
      %p137 = scmp.ne.s32.totalorder %s132, %s134
      %p138 = scmp.eq.s32.totalorder %s23, 0
      %p139 = por %p137, %p138
      %p140 = scmp.ne.s32.totalorder %s132, %s134
      %p141 = scmp.eq.s32.totalorder %s28, 8
      %p142 = por %p140, %p141
      %p143 = scmp.ne.s32.totalorder %s134, %s135
      %p144 = scmp.eq.s32.totalorder %s28, 0
      %p145 = por %p143, %p144
      %p146 = scmp.ne.s32.totalorder %s134, %s135
      %p147 = scmp.eq.s32.totalorder %s29, 8
      %p148 = por %p146, %p147
      %p150 = scmp.ne.s32.totalorder %s135, %s149
      %p151 = scmp.eq.s32.totalorder %s29, 0
      %p152 = por %p150, %p151
      %s153 = ssub.s32 %s31, %s38
      %p154 = scmp.eq.s32.totalorder %s153, 0
      %s156 = sadd.s32 %s155, 1
      %s157 = scalar_select %p154, %s155, %s156
      %p160 = pneg %p154
      %p161 = scmp.eq.s32.totalorder %s23, 8
      %p162 = por %p160, %p161
      %p163 = scmp.ne.s32.totalorder %s155, %s158
      %p164 = scmp.eq.s32.totalorder %s23, 0
      %p165 = por %p163, %p164
      %p166 = scmp.ne.s32.totalorder %s155, %s158
      %p167 = scmp.eq.s32.totalorder %s28, 8
      %p168 = por %p166, %p167
      %p169 = scmp.ne.s32.totalorder %s158, %s159
      %p170 = scmp.eq.s32.totalorder %s28, 0
      %p171 = por %p169, %p170
      %p172 = scmp.ne.s32.totalorder %s158, %s159
      %p173 = scmp.eq.s32.totalorder %s29, 8
      %p174 = por %p172, %p173
      %p176 = scmp.ne.s32.totalorder %s159, %s175
      %p177 = scmp.eq.s32.totalorder %s29, 0
      %p178 = por %p176, %p177
      %s179 = ssub.s32 %s31, %s38
      %p180 = scmp.eq.s32.totalorder %s179, 0
      %s182 = sadd.s32 %s181, 1
      %s183 = scalar_select %p180, %s181, %s182
      %p186 = pneg %p180
      %p187 = scmp.eq.s32.totalorder %s23, 8
      %p188 = por %p186, %p187
      %p189 = scmp.ne.s32.totalorder %s181, %s184
      %p190 = scmp.eq.s32.totalorder %s23, 0
      %p191 = por %p189, %p190
      %p192 = scmp.ne.s32.totalorder %s181, %s184
      %p193 = scmp.eq.s32.totalorder %s28, 8
      %p194 = por %p192, %p193
      %p195 = scmp.ne.s32.totalorder %s184, %s185
      %p196 = scmp.eq.s32.totalorder %s28, 0
      %p197 = por %p195, %p196
      %p198 = scmp.ne.s32.totalorder %s184, %s185
      %p199 = scmp.eq.s32.totalorder %s29, 8
      %p200 = por %p198, %p199
      %p202 = scmp.ne.s32.totalorder %s185, %s201
      %p203 = scmp.eq.s32.totalorder %s29, 0
      %p204 = por %p202, %p203
      %s205 = ssub.s32 %s30, %s42
      %s206 = ssub.s32 %s31, %s38
      %s207 = sor.u32 %s205, %s206
      %p208 = scmp.eq.s32.totalorder %s207, 0
      %s210 = sadd.s32 %s209, 1
      %s211 = scalar_select %p208, %s209, %s210
      %p214 = pneg %p208
      %p215 = scmp.eq.s32.totalorder %s23, 8
      %p216 = por %p214, %p215
      %p217 = scmp.ne.s32.totalorder %s209, %s212
      %p218 = scmp.eq.s32.totalorder %s23, 0
      %p219 = por %p217, %p218
      %p220 = scmp.ne.s32.totalorder %s209, %s212
      %p221 = scmp.eq.s32.totalorder %s28, 8
      %p222 = por %p220, %p221
      %p223 = scmp.ne.s32.totalorder %s212, %s213
      %p224 = scmp.eq.s32.totalorder %s28, 0
      %p225 = por %p223, %p224
      %p226 = scmp.ne.s32.totalorder %s212, %s213
      %p227 = scmp.eq.s32.totalorder %s29, 8
      %p228 = por %p226, %p227
      %p230 = scmp.ne.s32.totalorder %s213, %s229
      %p231 = scmp.eq.s32.totalorder %s29, 0
      %p232 = por %p230, %p231
      %p233 = scmp.le.s32.totalorder 1, %s23
      %p234 = scmp.lt.s32.totalorder %s23, 10
      %p235 = pnand %p233, %p234
      %p236 = pneg %p235
      // Predicated region
      $region9: #{tpu_custom_call.1} parent=5 // pred_check
        _
      $region10: #{tpu_custom_call.1} parent=5 // pred_check_branch
        %238 = sbr.rel (%p235) target = $region12
      $region11: #{tpu_custom_call.1} parent=5 // pred_region
        %s239 = ssub.s32 %s23, 1
        // Predicated region
        $region13: #{tpu_custom_call.1} parent=11 // pred_check
          %p240 = pneg %p82
        $region14: #{tpu_custom_call.1} parent=11 // pred_check_branch
          %242 = sbr.rel (%p240) target = $region16
        $region15: #{tpu_custom_call.1} parent=11 // pred_region
          %244 = vsyncadd [#allocation7], 0
          %s245 = sshll.u32 %s1, 4
          %s246 = int_to_ptr.hbm [resolvable:$true] %s245
          %s247 = sshll.u32 [#allocation6], 4
          %s248 = int_to_ptr.vmem [resolvable:$true] %s247
          %253 = dma.hbm_to_vmem [thread:$0]  %s246, 2048, %s248, [#allocation7], 128, 128, 8
        $region16: #{tpu_custom_call.1} parent=11 // pred_fallthru
          _
        // Predicated region
        $region17: #{tpu_custom_call.1} parent=11 // pred_check
          %p254 = pneg %p103
        $region18: #{tpu_custom_call.1} parent=11 // pred_check_branch
          %256 = sbr.rel (%p254) target = $region20
        $region19: #{tpu_custom_call.1} parent=11 // pred_region
          _
        $region20: #{tpu_custom_call.1} parent=11 // pred_fallthru
          _
        // Predicated region
        $region21: #{tpu_custom_call.1} parent=11 // pred_check
          %p257 = pneg %p124
        $region22: #{tpu_custom_call.1} parent=11 // pred_check_branch
          %259 = sbr.rel (%p257) target = $region24
        $region23: #{tpu_custom_call.1} parent=11 // pred_region
          _
        $region24: #{tpu_custom_call.1} parent=11 // pred_fallthru
          _
        // Predicated region
        $region25: #{tpu_custom_call.1} parent=11 // pred_check
          %p260 = pneg %p145
        $region26: #{tpu_custom_call.1} parent=11 // pred_check_branch
          %262 = sbr.rel (%p260) target = $region28
        $region27: #{tpu_custom_call.1} parent=11 // pred_region
          %264 = vsyncadd [#allocation7], 0
          %s266 = sshll.u32 %s4, 4
          %s267 = int_to_ptr.hbm [resolvable:$true] %s266
          %s268 = sshll.u32 [#allocation8], 4
          %s269 = int_to_ptr.vmem [resolvable:$true] %s268
          %271 = dma.hbm_to_vmem [thread:$0]  %s267, 16, %s269, [#allocation7]
        $region28: #{tpu_custom_call.1} parent=11 // pred_fallthru
          _
      $region12: #{tpu_custom_call.1} parent=5 // pred_fallthru
        _
      %p272 = scmp.lt.s32.totalorder %s23, 9
      // Predicated region
      $region29: #{tpu_custom_call.1} parent=5 // pred_check
        %p273 = pneg %p272
      $region30: #{tpu_custom_call.1} parent=5 // pred_check_branch
        %275 = sbr.rel (%p273) target = $region32
      $region31: #{tpu_custom_call.1} parent=5 // pred_region
        // Predicated region
        $region33: #{tpu_custom_call.1} parent=31 // pred_check
          %p276 = pneg %p55
        $region34: #{tpu_custom_call.1} parent=31 // pred_check_branch
          %278 = sbr.rel (%p276) target = $region36
        $region35: #{tpu_custom_call.1} parent=31 // pred_region
          %s279 = sand.u32 %s45, 1
          %s280 = scalar_lea.sflag [#allocation4], %s279
          %s281 = sand.u32 %s45, 1
          %s282 = smul.addr %s281, 8
          %s283 = scalar_lea.vmem [#allocation3], %s282
          %285 = vsyncadd %s280, 0
          %s286 = smul.addr %s30, 8
          %s287 = scalar_lea.hbm %s0, %s286
          %s289 = sshll.u32 %s287, 4
          %s290 = int_to_ptr.hbm [resolvable:$true] %s289
          %s291 = sshll.u32 %s283, 4
          %s292 = int_to_ptr.vmem [resolvable:$true] %s291
          %294 = dma.hbm_to_vmem [thread:$0]  %s290, 128, %s292, %s280
        $region36: #{tpu_custom_call.1} parent=31 // pred_fallthru
          _
        // Predicated region
        $region37: #{tpu_custom_call.1} parent=31 // pred_check
          %p295 = pneg %p165
        $region38: #{tpu_custom_call.1} parent=31 // pred_check_branch
          %297 = sbr.rel (%p295) target = $region40
        $region39: #{tpu_custom_call.1} parent=31 // pred_region
          %s298 = sand.u32 %s155, 1
          %s299 = scalar_lea.sflag [#allocation10], %s298
          %s300 = sand.u32 %s155, 1
          %s301 = smul.addr %s300, 128
          %s302 = scalar_lea.vmem [#allocation9], %s301
          %304 = vsyncadd %s299, 0
          %s305 = smul.addr %s31, 8
          %s306 = scalar_lea.hbm %s5, %s305
          %s307 = sshll.u32 %s306, 4
          %s308 = int_to_ptr.hbm [resolvable:$true] %s307
          %s309 = sshll.u32 %s302, 4
          %s310 = int_to_ptr.vmem [resolvable:$true] %s309
          %315 = dma.hbm_to_vmem [thread:$0]  %s308, 2048, %s310, %s299, 384, 128, 8
        $region40: #{tpu_custom_call.1} parent=31 // pred_fallthru
          _
        // Predicated region
        $region41: #{tpu_custom_call.1} parent=31 // pred_check
          %p316 = pneg %p191
        $region42: #{tpu_custom_call.1} parent=31 // pred_check_branch
          %318 = sbr.rel (%p316) target = $region44
        $region43: #{tpu_custom_call.1} parent=31 // pred_region
          %p319 = scmp.lt.s32.totalorder %s31, 2
          %s320 = scalar_select %p319, %s31, 2
          %s321 = scalar_lea.vmem %s6, %s320
        $region44: #{tpu_custom_call.1} parent=31 // pred_fallthru
          _
      $region32: #{tpu_custom_call.1} parent=5 // pred_fallthru
        _
      %p322 = scmp.le.s32.totalorder 1, %s23
      %p323 = scmp.lt.s32.totalorder %s23, 10
      %p324 = pnand %p322, %p323
      %p325 = pneg %p324
      // Predicated region
      $region45: #{tpu_custom_call.1} parent=5 // pred_check
        _
      $region46: #{tpu_custom_call.1} parent=5 // pred_check_branch
        %327 = sbr.rel (%p324) target = $region48
      $region47: #{tpu_custom_call.1} parent=5 // pred_region
        %s328 = ssub.s32 %s23, 1
        %s329 = sand.u32 %s48, 1
        %s330 = scalar_lea.sflag [#allocation4], %s329
        %s331 = sand.u32 %s48, 1
        %s332 = smul.addr %s331, 8
        %s333 = scalar_lea.vmem [#allocation3], %s332
        // Predicated region
        $region49: #{tpu_custom_call.1} parent=47 // pred_check
          %p334 = pneg %p61
        $region50: #{tpu_custom_call.1} parent=47 // pred_check_branch
          %336 = sbr.rel (%p334) target = $region52
        $region51: #{tpu_custom_call.1} parent=47 // pred_region
          %338 = dma.done %s330, 128
        $region52: #{tpu_custom_call.1} parent=47 // pred_fallthru
          _
        // Predicated region
        $region53: #{tpu_custom_call.1} parent=47 // pred_check
          %p339 = pneg %p82
        $region54: #{tpu_custom_call.1} parent=47 // pred_check_branch
          %341 = sbr.rel (%p339) target = $region56
        $region55: #{tpu_custom_call.1} parent=47 // pred_region
          %343 = dma.done [#allocation7], 2048
        $region56: #{tpu_custom_call.1} parent=47 // pred_fallthru
          _
        // Predicated region
        $region57: #{tpu_custom_call.1} parent=47 // pred_check
          %p344 = pneg %p145
        $region58: #{tpu_custom_call.1} parent=47 // pred_check_branch
          %346 = sbr.rel (%p344) target = $region60
        $region59: #{tpu_custom_call.1} parent=47 // pred_region
          %348 = dma.done [#allocation7], 16
        $region60: #{tpu_custom_call.1} parent=47 // pred_fallthru
          _
        %s349 = sand.u32 %s158, 1
        %s350 = scalar_lea.sflag [#allocation10], %s349
        %s351 = sand.u32 %s158, 1
        %s352 = smul.addr %s351, 128
        %s353 = scalar_lea.vmem [#allocation9], %s352
        // Predicated region
        $region61: #{tpu_custom_call.1} parent=47 // pred_check
          %p354 = pneg %p171
        $region62: #{tpu_custom_call.1} parent=47 // pred_check_branch
          %356 = sbr.rel (%p354) target = $region64
        $region63: #{tpu_custom_call.1} parent=47 // pred_region
          %358 = dma.done %s350, 2048
        $region64: #{tpu_custom_call.1} parent=47 // pred_fallthru
          _
        %s359 = sand.u32 %s48, 1
        %s360 = scalar_lea.sflag [#allocation4], %s359
        %s361 = sand.u32 %s48, 1
        %s362 = smul.addr %s361, 8
        %s363 = scalar_lea.vmem [#allocation3], %s362
        %p364 = pneg %p61
        %p365 = pneg %p58
        %p366 = pneg %p82
        %p367 = pneg %p79
        %p368 = pneg %p103
        %p369 = pneg %p100
        %p370 = pneg %p124
        %p371 = pneg %p121
        %p372 = pneg %p145
        %p373 = pneg %p142
        %s374 = sand.u32 %s158, 1
        %s375 = scalar_lea.sflag [#allocation10], %s374
        %s376 = sand.u32 %s158, 1
        %s377 = smul.addr %s376, 128
        %s378 = scalar_lea.vmem [#allocation9], %s377
        %p379 = pneg %p171
        %p380 = pneg %p168
        %p381 = scmp.lt.s32.totalorder %s33, 2
        %s382 = scalar_select %p381, %s33, 2
        %s383 = scalar_lea.vmem %s6, %s382
        %p384 = pneg %p197
        %p385 = pneg %p194
        %p386 = pneg %p225
        %p387 = pneg %p222
        %s388 = sand.u32 %s212, 1
        %s389 = scalar_lea.sflag [#allocation5], %s388
        %s390 = sand.u32 %s212, 1
        %s391 = smul.addr %s390, 8
        %s392 = scalar_lea.vmem [#allocation11], %s391
        %p393 = scmp.lt.s32.totalorder %s33, 2
        %s394 = scalar_select %p393, %s33, 2
        %s395 = scalar_lea.vmem %s6, %s394
        %p396 = scmp.eq.s32.totalorder %s33, 0
        // Predicated region
        $region65: #{tpu_custom_call.1} parent=47 // pred_check
          %p397 = pneg %p396
        $region66: #{tpu_custom_call.1} parent=47 // pred_check_branch
          %399 = sbr.rel (%p397) target = $region68
        $region67: #{tpu_custom_call.1} parent=47 // pred_region
          %v400 = vld [vmem:[%s333] sm:$0xff]
          %v401 = vld [vmem:[#allocation6] sm:$0xff]
          %v402 = vld [vmem:[#allocation6 + $0x8] sm:$0xff]
          %v403 = vld [vmem:[#allocation6 + $0x10] sm:$0xff]
          %v404 = vld [vmem:[#allocation6 + $0x18] sm:$0xff]
          %v405 = vld [vmem:[#allocation6 + $0x20] sm:$0xff]
          %v406 = vld [vmem:[#allocation6 + $0x28] sm:$0xff]
          %v407 = vld [vmem:[#allocation6 + $0x30] sm:$0xff]
          %v408 = vld [vmem:[#allocation6 + $0x38] sm:$0xff]
          %v409 = vld [vmem:[#allocation6 + $0x40] sm:$0xff]
          %v410 = vld [vmem:[#allocation6 + $0x48] sm:$0xff]
          %v411 = vld [vmem:[#allocation6 + $0x50] sm:$0xff]
          %v412 = vld [vmem:[#allocation6 + $0x58] sm:$0xff]
          %v413 = vld [vmem:[#allocation6 + $0x60] sm:$0xff]
          %v414 = vld [vmem:[#allocation6 + $0x68] sm:$0xff]
          %v415 = vld [vmem:[#allocation6 + $0x70] sm:$0xff]
          %v416 = vld [vmem:[#allocation6 + $0x78] sm:$0xff]
          %v417 = vld [vmem:[%s2] sm:$0x1]
          %v419 = vperm.slane %v417, 0
          %421 = vmatpush.msra.mxu0 %v416
          %422 = vmatpush.msra.mxu0 %v415
          %423 = vmatpush.msra.mxu0 %v414
          %424 = vmatpush.msra.mxu0 %v413
          %425 = vmatpush.msra.mxu0 %v412
          %426 = vmatpush.msra.mxu0 %v411
          %427 = vmatpush.msra.mxu0 %v410
          %428 = vmatpush.msra.mxu0 %v409
          %429 = vmatpush.msra.mxu0 %v408
          %430 = vmatpush.msra.mxu0 %v407
          %431 = vmatpush.msra.mxu0 %v406
          %432 = vmatpush.msra.mxu0 %v405
          %433 = vmatpush.msra.mxu0 %v404
          %434 = vmatpush.msra.mxu0 %v403
          %435 = vmatpush.msra.mxu0 %v402
          %436 = vmatpush.msra.mxu0 %v401
          %437 = vmatmul.f32.gmra.mxu0 %v400
          %v438 = vpop.f32.mrf.mxu0
          %v439 = vadd.f32 %v419, %v438
          %440 = vdwg.mxu0
          %v441 = vmul.f32 %v439, 0.5
          %v442 = vmul.f32 %v439, 0.70710677
          %v443 = vmul.f32 %v442, %v442
          %v444 = vmin.f32 16.0, %v443
          %v445 = vmul.f32 %v444, 2.1237322e-06
          %v446 = vadd.f32 %v445, 0.00028619796
          %v447 = vmul.f32 %v444, %v446
          %v448 = vadd.f32 %v447, 0.0036580483
          %v449 = vmul.f32 %v444, %v448
          %v450 = vadd.f32 %v449, 0.05243302
          %v451 = vmul.f32 %v444, %v450
          %v452 = vadd.f32 %v451, 0.18741608
          %v453 = vmul.f32 %v444, %v452
          %v454 = vadd.f32 %v453, 1.1283791
          %v455 = vmul.f32 %v442, %v454
          %v456 = vmul.f32 %v444, 3.8918573e-05
          %v457 = vadd.f32 %v456, 0.001143296
          %v458 = vmul.f32 %v444, %v457
          %v459 = vadd.f32 %v458, 0.014752088
          %v460 = vmul.f32 %v444, %v459
          %v461 = vadd.f32 %v460, 0.112945676
          %v462 = vmul.f32 %v444, %v461
          %v463 = vadd.f32 %v462, 0.4994258
          %v464 = vmul.f32 %v444, %v463
          %v465 = vadd.f32 %v464, 1.0
          %v466 = vrcp.pop %v465
          %v467 = vmul.f32 %v465, %v466
          %v468 = vsub.f32 1.0, %v467
          %v469 = vmul.f32 %v466, %v468
          %v470 = vadd.f32 %v466, %v469
          %vm471 = vweird.f32 %v465
          %vm472 = vweird.f32 %v466
          %vm473 = vmor %vm471, %vm472
          %v474 = vsel %vm473, %v466, %v470
          %v475 = vand.u32 2147483647, %v465
          %vm476 = vcmp.eq.f32.partialorder %v475, 8.507059e+37
          %v477 = vand.u32 %v465, 2147483648
          %v478 = vor.u32 1.1754944e-38, %v477
          %v479 = vsel %vm476, %v478, %v474
          %v480 = vmul.f32 %v455, %v479
          %v481 = vmin.f32 %v480, 1.0
          %v482 = vmax.f32 %v481, -1.0
          %v483 = vadd.f32 %v482, 1.0
          %v484 = vmul.f32 %v441, %v483
          %485 = vadd.xlane.f32.xlu0 %v484
          %v486 = vpop.xlane.xlu0 %485
          %v487 = vrcp.pop 128.0
          %v488 = vmul.f32 128.0, %v487
          %v489 = vsub.f32 1.0, %v488
          %v490 = vmul.f32 %v487, %v489
          %v491 = vadd.f32 %v487, %v490
          %vm492 = vweird.f32 %v487
          %v493 = vsel %vm492, %v487, %v491
          %v494 = vmul.f32 %v486, %v493
          %v495 = vsub.f32 %v484, %v494
          %v496 = vmul.f32 %v495, %v495
          %497 = vadd.xlane.f32.xlu0 %v496
          %v498 = vpop.xlane.xlu0 %497
          %v499 = vmul.f32 %v498, %v493
          %v500 = vadd.f32 %v499, 1e-12
          %v501 = vrsqrt.pop %v500
          %v502 = vmul.f32 %v501, %v500
          %v503 = vmul.f32 %v502, %v501
          %v504 = vmul.f32 0.5, %v503
          %v505 = vsub.f32 1.5, %v504
          %v506 = vmul.f32 %v501, %v505
          %vm507 = vweird.f32 %v500
          %vm508 = vweird.f32 %v501
          %vm509 = vmor %vm507, %vm508
          %v510 = vsel %vm509, %v501, %v506
          %v511 = vmul.f32 %v495, %v510
          %v512 = vld [vmem:[%s3] sm:$0x1]
          %v514 = vperm.slane %v512, 0
          %v516 = vmul.f32 %v511, %v514
          %v517 = vld [vmem:[#allocation8] sm:$0x1]
          %v519 = vperm.slane %v517, 0
          %v521 = vadd.f32 %v516, %v519
          %522 = vst [vmem:[#allocation2] sm:$0xff] %v521
        $region68: #{tpu_custom_call.1} parent=47 // pred_fallthru
          _
        %v523 = vld [vmem:[#allocation2] sm:$0xff]
        %v524 = vld [vmem:[%s353] sm:$0xff]
        %v525 = vld [vmem:[%s353 + $0x8] sm:$0xff]
        %v526 = vld [vmem:[%s353 + $0x10] sm:$0xff]
        %v527 = vld [vmem:[%s353 + $0x18] sm:$0xff]
        %v528 = vld [vmem:[%s353 + $0x20] sm:$0xff]
        %v529 = vld [vmem:[%s353 + $0x28] sm:$0xff]
        %v530 = vld [vmem:[%s353 + $0x30] sm:$0xff]
        %v531 = vld [vmem:[%s353 + $0x38] sm:$0xff]
        %v532 = vld [vmem:[%s353 + $0x40] sm:$0xff]
        %v533 = vld [vmem:[%s353 + $0x48] sm:$0xff]
        %v534 = vld [vmem:[%s353 + $0x50] sm:$0xff]
        %v535 = vld [vmem:[%s353 + $0x58] sm:$0xff]
        %v536 = vld [vmem:[%s353 + $0x60] sm:$0xff]
        %v537 = vld [vmem:[%s353 + $0x68] sm:$0xff]
        %v538 = vld [vmem:[%s353 + $0x70] sm:$0xff]
        %v539 = vld [vmem:[%s353 + $0x78] sm:$0xff]
        %v540 = vld [vmem:[%s395] sm:$0x1]
        %v542 = vperm.slane %v540, 0
        %544 = vmatpush.msra.mxu0 %v539
        %545 = vmatpush.msra.mxu0 %v538
        %546 = vmatpush.msra.mxu0 %v537
        %547 = vmatpush.msra.mxu0 %v536
        %548 = vmatpush.msra.mxu0 %v535
        %549 = vmatpush.msra.mxu0 %v534
        %550 = vmatpush.msra.mxu0 %v533
        %551 = vmatpush.msra.mxu0 %v532
        %552 = vmatpush.msra.mxu0 %v531
        %553 = vmatpush.msra.mxu0 %v530
        %554 = vmatpush.msra.mxu0 %v529
        %555 = vmatpush.msra.mxu0 %v528
        %556 = vmatpush.msra.mxu0 %v527
        %557 = vmatpush.msra.mxu0 %v526
        %558 = vmatpush.msra.mxu0 %v525
        %559 = vmatpush.msra.mxu0 %v524
        %560 = vmatmul.f32.gmra.mxu0 %v523
        %v561 = vpop.f32.mrf.mxu0
        %v562 = vadd.f32 %v542, %v561
        %563 = vdwg.mxu0
        %564 = vst [vmem:[%s392] sm:$0xff] %v562
        %s565 = sand.u32 %s212, 1
        %s566 = scalar_lea.sflag [#allocation5], %s565
        %s567 = sand.u32 %s212, 1
        %s568 = smul.addr %s567, 8
        %s569 = scalar_lea.vmem [#allocation11], %s568
        // Predicated region
        $region69: #{tpu_custom_call.1} parent=47 // pred_check
          %p570 = pneg %p222
        $region70: #{tpu_custom_call.1} parent=47 // pred_check_branch
          %572 = sbr.rel (%p570) target = $region72
        $region71: #{tpu_custom_call.1} parent=47 // pred_region
          %574 = vsyncadd %s566, 0
          %s575 = smul.addr %s32, 3
          %s576 = sadd.s32 %s33, %s575
          %s577 = smul.addr %s576, 8
          %s578 = scalar_lea.hbm %s7, %s577
          %s580 = sshll.u32 %s569, 4
          %s581 = int_to_ptr.vmem [resolvable:$true] %s580
          %s582 = sshll.u32 %s578, 4
          %s583 = int_to_ptr.hbm [resolvable:$true] %s582
          %585 = dma.vmem_to_hbm [thread:$0]  %s581, 128, %s583, %s566
        $region72: #{tpu_custom_call.1} parent=47 // pred_fallthru
          _
      $region48: #{tpu_custom_call.1} parent=5 // pred_fallthru
        _
      %p586 = scmp.le.s32.totalorder 2, %s23
      // Predicated region
      $region73: #{tpu_custom_call.1} parent=5 // pred_check
        %p587 = pneg %p586
      $region74: #{tpu_custom_call.1} parent=5 // pred_check_branch
        %589 = sbr.rel (%p587) target = $region76
      $region75: #{tpu_custom_call.1} parent=5 // pred_region
        %s590 = ssub.s32 %s23, 2
        // Predicated region
        $region77: #{tpu_custom_call.1} parent=75 // pred_check
          %p591 = pneg %p228
        $region78: #{tpu_custom_call.1} parent=75 // pred_check_branch
          %593 = sbr.rel (%p591) target = $region80
        $region79: #{tpu_custom_call.1} parent=75 // pred_region
          %s594 = sand.u32 %s213, 1
          %s595 = scalar_lea.sflag [#allocation5], %s594
          %s596 = sand.u32 %s213, 1
          %s597 = smul.addr %s596, 8
          %s598 = scalar_lea.vmem [#allocation11], %s597
          %600 = dma.done %s595, 128
        $region80: #{tpu_custom_call.1} parent=75 // pred_fallthru
          _
      $region76: #{tpu_custom_call.1} parent=5 // pred_fallthru
        _
    $region6: #{tpu_custom_call.1} parent=1 // loop_footer
      %s27 = sadd.s32 1, %s23
    $region7: #{tpu_custom_call.1} parent=1 // loop_footer_branch
      %22 = sbr.rel target = $region3
    $region8: #{tpu_custom_call.1} parent=1 // loop_exit
      _
    %601 = vsyncpa [#allocation4], 1
    %s602 = scalar_lea.sflag [#allocation4], 1
    %603 = vsyncpa %s602, 1
    %604 = vsyncpa [#allocation7], 1
    %605 = vsyncpa [#allocation10], 1
    %s606 = scalar_lea.sflag [#allocation10], 1
    %607 = vsyncpa %s606, 1
    %608 = vsyncpa [#allocation5], 1
    %s609 = scalar_lea.sflag [#allocation5], 1
    %610 = vsyncpa %s609, 1

</llo_original>
